<compile_context>
chip_gen: v5e
topology: v5e:2x2
jax: 0.10.0
libtpu: 0.0.40
codegen_flags: <defaults>
</compile_context>

<pallas_src>
import functools
import math

import jax
import jax.numpy as jnp
from jax.experimental import pallas as pl
from jax.experimental.pallas import tpu as pltpu


def _round_up(x, m):
    return (x + m - 1) // m * m


def _cdiv(a, b):
    return -(-a // b)


# ------------------------------- kernel -------------------------------------
def _focal_loss_kernel(x_ref, y_ref, o_ref, *,
                       gamma, n_valid, tile_rows, lanes, steps, apply_mask):
    c = pl.program_id(0)          # core-split index ("parallel")
    j = pl.program_id(1)          # streaming/reduction step ("arbitrary")

    # Output block (8, lanes) is resident across j -> use it as the accumulator.
    @pl.when(j == 0)
    def _():
        o_ref[...] = jnp.zeros_like(o_ref)

    # Stream at native dtype, upcast in-kernel (HBM-bound kernel: fewer bytes win).
    x = x_ref[...].astype(jnp.float32)
    y = y_ref[...].astype(jnp.float32)

    # Numerically stable BCE-with-logits (same formulation torch uses):
    #   bce = max(x, 0) - x*y + log1p(exp(-|x|))
    e = jnp.exp(-jnp.abs(x))
    bce = jnp.maximum(x, 0.0) - x * y + jnp.log1p(e)

    # Focal weighting: (1 - exp(-bce)) ** gamma * bce.  Constant alpha and the
    # 1/N of the mean are folded in by the wrapper.
    one_minus_pt = 1.0 - jnp.exp(-bce)
    if float(gamma) == int(gamma):
        w = one_minus_pt ** int(gamma)           # lax.integer_pow -> plain muls
    else:
        w = one_minus_pt ** float(gamma)
    focal = w * bce

    def _accumulate(val):
        # Fold the (tile_rows, lanes) tile into the vreg-sized (8, lanes) block.
        o_ref[...] += val.reshape(tile_rows // 8, 8, lanes).sum(axis=0)

    if apply_mask:
        # Only blocks that reach past the valid element count pay for the mask.
        base = (c * steps + j) * (tile_rows * lanes)        # int32; n < 2**31
        block_end = base + tile_rows * lanes

        @pl.when(block_end > n_valid)
        def _():
            ridx = jax.lax.broadcasted_iota(jnp.int32, (tile_rows, lanes), 0)
            cidx = jax.lax.broadcasted_iota(jnp.int32, (tile_rows, lanes), 1)
            flat_idx = base + ridx * lanes + cidx
            _accumulate(jnp.where(flat_idx < n_valid, focal, 0.0))

        @pl.when(block_end <= n_valid)
        def _():
            _accumulate(focal)
    else:
        _accumulate(focal)


# ------------------------------- wrapper -------------------------------------
def focal_loss(x_out, y, alpha=1.0, gamma=2.0, *,
               tile_rows=2048, lanes=128, num_splits=2):
    """Pallas TPU FocalLoss.forward; returns a 0-d float32 array (the mean)."""
    assert x_out.shape == y.shape, (x_out.shape, y.shape)
    n = math.prod(x_out.shape)
    assert n > 0, "FocalLoss of an empty tensor is undefined"

    # Stream native dtypes (bf16/int8 halve/quarter HBM traffic); only bool is
    # converted here (awkward block layout otherwise).
    if x_out.dtype == jnp.bool_:
        x_out = x_out.astype(jnp.float32)
    if y.dtype == jnp.bool_:
        y = y.astype(jnp.float32)

    rows = _cdiv(n, lanes)
    sub = 32                                     # sublane multiple for f32/bf16/int8
    half = _cdiv(rows, num_splits)
    tr = min(_round_up(tile_rows, sub), _round_up(half, sub))
    steps = _cdiv(rows, num_splits * tr)
    rows_p = num_splits * steps * tr
    pad = rows_p * lanes - n

    xf = x_out.reshape(-1)
    yf = y.reshape(-1)
    if pad:
        # Extra pass only when the flattened size is not a tile multiple; padded
        # elements are zeroed and masked out in-kernel.
        xf = jnp.pad(xf, (0, pad))
        yf = jnp.pad(yf, (0, pad))
    x2 = xf.reshape(rows_p, lanes)
    y2 = yf.reshape(rows_p, lanes)

    kernel = functools.partial(
        _focal_loss_kernel, gamma=float(gamma), n_valid=n,
        tile_rows=tr, lanes=lanes, steps=steps, apply_mask=(pad > 0))

    partials = pl.pallas_call(
        kernel,
        out_shape=jax.ShapeDtypeStruct((num_splits * 8, lanes), jnp.float32),
        grid=(num_splits, steps),
        in_specs=[pl.BlockSpec((tr, lanes), lambda c, j: (c * steps + j, 0)),
                  pl.BlockSpec((tr, lanes), lambda c, j: (c * steps + j, 0))],
        out_specs=pl.BlockSpec((8, lanes), lambda c, j: (c, 0)),
        compiler_params=pltpu.CompilerParams(
            dimension_semantics=("parallel", "arbitrary"),   # megacore on v7x
            vmem_limit_bytes=32 * 1024 * 1024),
    )(x2, y2)

    # Tiny (num_splits*8, 128) reduction + alpha * mean scaling in XLA.
    return jnp.sum(partials) * (float(alpha) / float(n))


# ------------------------------ reference ------------------------------------
def _focal_loss_ref(x, y, alpha=1.0, gamma=2.0):
    x = x.astype(jnp.float32)
    y = y.astype(jnp.float32)
    loss = jnp.maximum(x, 0.0) - x * y + jnp.log1p(jnp.exp(-jnp.abs(x)))
    focal = alpha * (1.0 - jnp.exp(-loss)) ** gamma * loss
    return jnp.mean(focal)


if __name__ == "__main__":
    key = jax.random.PRNGKey(0)
    kx, ky, kx2, ky2, kx3, ky3, kx4, ky4 = jax.random.split(key, 8)

    # main example: logits / binary targets of shape (2, 4, 16, 16)
    x = jax.random.normal(kx, (2, 4, 16, 16), jnp.float32)
    y = jax.random.bernoulli(ky, 0.5, (2, 4, 16, 16)).astype(jnp.float32)

    loss_fn = jax.jit(lambda a, b: focal_loss(a, b, alpha=1.0, gamma=2.0))
    out = jax.block_until_ready(loss_fn(x, y))
    ref = jax.block_until_ready(_focal_loss_ref(x, y))
    assert out.shape == () and out.dtype == jnp.float32
    assert jnp.allclose(out, ref, rtol=1e-5, atol=1e-6), (out, ref)

    # ragged case (exercises the predicated in-kernel tail mask): (2, 11)
    x_s = jax.random.normal(kx2, (2, 11), jnp.float32)
    y_s = jax.random.bernoulli(ky2, 0.5, (2, 11)).astype(jnp.float32)
    out_s = jax.block_until_ready(jax.jit(lambda a, b: focal_loss(a, b))(x_s, y_s))
    ref_s = jax.block_until_ready(_focal_loss_ref(x_s, y_s))
    assert jnp.allclose(out_s, ref_s, rtol=1e-5, atol=1e-6), (out_s, ref_s)

    # multi-step, no-padding case (exercises the unmasked accumulate path and
    # both core-splits doing multiple reduction steps): 2*2*64*128 elements.
    x_m = jax.random.normal(kx3, (2, 128, 128), jnp.float32)
    y_m = jax.random.bernoulli(ky3, 0.5, (2, 128, 128)).astype(jnp.float32)
    out_m = jax.block_until_ready(
        jax.jit(lambda a, b: focal_loss(a, b, tile_rows=64))(x_m, y_m))
    ref_m = jax.block_until_ready(_focal_loss_ref(x_m, y_m))
    assert jnp.allclose(out_m, ref_m, rtol=1e-5, atol=1e-6), (out_m, ref_m)

    # bf16 logits streamed at native width, upcast in-kernel.
    x_b = jax.random.normal(kx4, (4, 33), jnp.float32).astype(jnp.bfloat16)
    y_b = jax.random.bernoulli(ky4, 0.5, (4, 33)).astype(jnp.float32)
    out_b = jax.block_until_ready(jax.jit(lambda a, b: focal_loss(a, b))(x_b, y_b))
    ref_b = jax.block_until_ready(_focal_loss_ref(x_b, y_b))
    assert jnp.allclose(out_b, ref_b, rtol=1e-5, atol=1e-6), (out_b, ref_b)

    print("KERNEL_OK")
</pallas_src>

<mosaic_0001>
module attributes {stable_mosaic.version = 11 : i64} {
  func.func @_focal_loss_kernel(%arg0: i32, %arg1: i32, %arg2: memref<32x128xf32, #tpu.memory_space<vmem>>, %arg3: memref<32x128xf32, #tpu.memory_space<vmem>>, %arg4: memref<8x128xf32, #tpu.memory_space<vmem>>) attributes {dimension_semantics = [#tpu.dimension_semantics<parallel>, #tpu.dimension_semantics<arbitrary>], iteration_bounds = array<i64: 2, 1>, scalar_prefetch = 0 : i64, scratch_operands = 0 : i64, tpu.core_type = #tpu.core_type<tc>, window_params = [{transform_indices = @transform_0, window_bounds = array<i64: 32, 128>}, {transform_indices = @transform_1, window_bounds = array<i64: 32, 128>}, {transform_indices = @transform_2, window_bounds = array<i64: 8, 128>}]} {
    %c0_i32 = arith.constant 0 : i32
    %0 = arith.cmpi eq, %arg1, %c0_i32 : i32
    %1 = arith.extui %0 : i1 to i32
    %c0_i32_0 = arith.constant 0 : i32
    %2 = arith.cmpi ne, %1, %c0_i32_0 : i32
    scf.if %2 {
      %cst_11 = arith.constant 0.000000e+00 : f32
      %32 = vector.broadcast %cst_11 : f32 to vector<8x128xf32>
      %c0_12 = arith.constant 0 : index
      %c0_13 = arith.constant 0 : index
      %33 = vector.load %arg4[%c0_12, %c0_13] : memref<8x128xf32, #tpu.memory_space<vmem>>, vector<8x128xf32>
      tpu.vector_store %arg4[%c0_12, %c0_13], %32 {strides = array<i32>} : memref<8x128xf32, #tpu.memory_space<vmem>>, vector<8x128xf32>,
    } else {
    }
    %c0 = arith.constant 0 : index
    %c0_1 = arith.constant 0 : index
    %3 = vector.load %arg2[%c0, %c0_1] : memref<32x128xf32, #tpu.memory_space<vmem>>, vector<32x128xf32>
    %c0_2 = arith.constant 0 : index
    %c0_3 = arith.constant 0 : index
    %4 = vector.load %arg3[%c0_2, %c0_3] : memref<32x128xf32, #tpu.memory_space<vmem>>, vector<32x128xf32>
    %5 = math.absf %3 : vector<32x128xf32>
    %cst = arith.constant 0.000000e+00 : f32
    %6 = vector.broadcast %cst : f32 to vector<32x128xf32>
    %7 = arith.subf %6, %5 : vector<32x128xf32>
    %8 = math.exp %7 : vector<32x128xf32>
    %cst_4 = arith.constant 0.000000e+00 : f32
    %9 = vector.broadcast %cst_4 : f32 to vector<32x128xf32>
    %10 = arith.maximumf %3, %9 : vector<32x128xf32>
    %11 = arith.mulf %3, %4 : vector<32x128xf32>
    %12 = arith.subf %10, %11 : vector<32x128xf32>
    %13 = math.log1p %8 : vector<32x128xf32>
    %14 = arith.addf %12, %13 : vector<32x128xf32>
    %cst_5 = arith.constant 0.000000e+00 : f32
    %15 = vector.broadcast %cst_5 : f32 to vector<32x128xf32>
    %16 = arith.subf %15, %14 : vector<32x128xf32>
    %17 = math.exp %16 : vector<32x128xf32>
    %cst_6 = arith.constant 1.000000e+00 : f32
    %18 = vector.broadcast %cst_6 : f32 to vector<32x128xf32>
    %19 = arith.subf %18, %17 : vector<32x128xf32>
    %20 = arith.mulf %19, %19 : vector<32x128xf32>
    %21 = arith.mulf %20, %14 : vector<32x128xf32>
    %c1_i32 = arith.constant 1 : i32
    %22 = arith.muli %arg0, %c1_i32 : i32
    %23 = arith.addi %22, %arg1 : i32
    %c4096_i32 = arith.constant 4096 : i32
    %24 = arith.muli %23, %c4096_i32 : i32
    %c4096_i32_7 = arith.constant 4096 : i32
    %25 = arith.addi %24, %c4096_i32_7 : i32
    %c2048_i32 = arith.constant 2048 : i32
    %26 = arith.cmpi sgt, %25, %c2048_i32 : i32
    %27 = arith.extui %26 : i1 to i32
    %c0_i32_8 = arith.constant 0 : i32
    %28 = arith.cmpi ne, %27, %c0_i32_8 : i32
    scf.if %28 {
      %32 = tpu.iota {dimensions = array<i32: 0>} : vector<32x128xi32>
      %33 = tpu.iota {dimensions = array<i32: 1>} : vector<32x128xi32>
      %c128_i32 = arith.constant 128 : i32
      %34 = vector.broadcast %c128_i32 : i32 to vector<32x128xi32>
      %35 = arith.muli %32, %34 : vector<32x128xi32>
      %36 = vector.broadcast %24 : i32 to vector<32x128xi32>
      %37 = arith.addi %36, %35 : vector<32x128xi32>
      %38 = arith.addi %37, %33 : vector<32x128xi32>
      %c2048_i32_11 = arith.constant 2048 : i32
      %39 = vector.broadcast %c2048_i32_11 : i32 to vector<32x128xi32>
      %40 = arith.cmpi slt, %38, %39 : vector<32x128xi32>
      %cst_12 = arith.constant 0.000000e+00 : f32
      %41 = vector.broadcast %cst_12 : f32 to vector<32x128xf32>
      %42 = arith.select %40, %21, %41 : vector<32x128xi1>, vector<32x128xf32>
      %c0_13 = arith.constant 0 : index
      %c0_14 = arith.constant 0 : index
      %43 = vector.load %arg4[%c0_13, %c0_14] : memref<8x128xf32, #tpu.memory_space<vmem>>, vector<8x128xf32>
      %44 = vector.shape_cast %42 : vector<32x128xf32> to vector<4x8x128xf32>
      %cst_15 = arith.constant dense<0.000000e+00> : vector<8x128xf32>
      %45 = vector.multi_reduction <add>, %44, %cst_15 [0] : vector<4x8x128xf32> to vector<8x128xf32>
      %46 = arith.addf %43, %45 : vector<8x128xf32>
      %c0_16 = arith.constant 0 : index
      %c0_17 = arith.constant 0 : index
      %47 = vector.load %arg4[%c0_16, %c0_17] : memref<8x128xf32, #tpu.memory_space<vmem>>, vector<8x128xf32>
      tpu.vector_store %arg4[%c0_16, %c0_17], %46 {strides = array<i32>} : memref<8x128xf32, #tpu.memory_space<vmem>>, vector<8x128xf32>,
    } else {
    }
    %c2048_i32_9 = arith.constant 2048 : i32
    %29 = arith.cmpi sle, %25, %c2048_i32_9 : i32
    %30 = arith.extui %29 : i1 to i32
    %c0_i32_10 = arith.constant 0 : i32
    %31 = arith.cmpi ne, %30, %c0_i32_10 : i32
    scf.if %31 {
      %c0_11 = arith.constant 0 : index
      %c0_12 = arith.constant 0 : index
      %32 = vector.load %arg4[%c0_11, %c0_12] : memref<8x128xf32, #tpu.memory_space<vmem>>, vector<8x128xf32>
      %33 = vector.shape_cast %21 : vector<32x128xf32> to vector<4x8x128xf32>
      %cst_13 = arith.constant dense<0.000000e+00> : vector<8x128xf32>
      %34 = vector.multi_reduction <add>, %33, %cst_13 [0] : vector<4x8x128xf32> to vector<8x128xf32>
      %35 = arith.addf %32, %34 : vector<8x128xf32>
      %c0_14 = arith.constant 0 : index
      %c0_15 = arith.constant 0 : index
      %36 = vector.load %arg4[%c0_14, %c0_15] : memref<8x128xf32, #tpu.memory_space<vmem>>, vector<8x128xf32>
      tpu.vector_store %arg4[%c0_14, %c0_15], %35 {strides = array<i32>} : memref<8x128xf32, #tpu.memory_space<vmem>>, vector<8x128xf32>,
    } else {
    }
    return
  }
  func.func @transform_0(%arg0: i32, %arg1: i32) -> (i32, i32) {
    %c1_i32 = arith.constant 1 : i32
    %0 = arith.muli %arg0, %c1_i32 : i32
    %1 = arith.addi %0, %arg1 : i32
    %c0_i32 = arith.constant 0 : i32
    %c0_i32_0 = arith.constant 0 : i32
    return %1, %c0_i32 : i32, i32
  }
  func.func @transform_1(%arg0: i32, %arg1: i32) -> (i32, i32) {
    %c1_i32 = arith.constant 1 : i32
    %0 = arith.muli %arg0, %c1_i32 : i32
    %1 = arith.addi %0, %arg1 : i32
    %c0_i32 = arith.constant 0 : i32
    %c0_i32_0 = arith.constant 0 : i32
    return %1, %c0_i32 : i32, i32
  }
  func.func @transform_2(%arg0: i32, %arg1: i32) -> (i32, i32) {
    %c0_i32 = arith.constant 0 : i32
    %c0_i32_0 = arith.constant 0 : i32
    return %arg0, %c0_i32 : i32, i32
  }
}

</mosaic_0001>

<llo_original>
// kernel: _lambda_.1
$region0: #{_lambda_.1}
  #allocation0 [shape = 'u32[]', space=smem, size = 0x4, offset = 0x4, fixed_abs, tag = 'smem constant byte address 0x4 - core index']
  #allocation1 [shape = 'u32[72,128]{1,0:T(1,128)}', space=vmem, size = 0x9000, scoped, tag = 'internal scratch']
  %s0 = inlined_call_operand.vmem [shape: f32[64,128], index: 0, kind: input, shape index: {}]
  %s1 = inlined_call_operand.vmem [shape: f32[64,128], index: 1, kind: input, shape index: {}]
  %s2 = inlined_call_operand.vmem [shape: f32[16,128], index: 2, kind: output, shape index: {}]
  %s3 = sld [smem:[#allocation0]]
  $region53: #{_lambda_.1} parent=0
    _
  %s5 = ssub.s32 1, %s3
  %s6 = scalar_select 0, %s5, %s3
  loop: start=0, step=1, limit=4
  $region2: #{_lambda_.1} parent=0 // loop_pre_header
    _
  $region3: #{_lambda_.1} parent=0 // loop_header
    %s8 = sphi 0, %s12
    %p9 = scmp.ge.s32.totalorder %s8, 4
    %s15 = sphi 0, %s27
    %s16 = sphi 0, %s23
    %s17 = sphi 0, %s15
    %s18 = sphi 0, %s16
    %s19 = sphi 0, %s17
    %s20 = sphi 0, %s18
    %s32 = sphi 0, %s34
    %s35 = sphi 0, %s32
    %s36 = sphi 0, %s35
    %s52 = sphi 0, %s36
    %s60 = sphi 0, %s62
    %s63 = sphi 0, %s60
    %s64 = sphi 0, %s63
    %s80 = sphi 0, %s64
    %s86 = sphi 0, %s88
    %s89 = sphi 0, %s86
    %s90 = sphi 0, %s89
    %s106 = sphi 0, %s90
  $region4: #{_lambda_.1} parent=0 // loop_header_branch
    %11 = sbr.rel (%p9) target = $region8
  $region5: #{_lambda_.1} parent=0 // loop_body
    %s13 = ssub.s32 %s8, 1
    %s14 = ssub.s32 %s8, 2
    %s21 = sadd.s32 1, %s16
    %p22 = scmp.ge.s32.totalorder %s21, 1
    %s23 = scalar_select %p22, 0, %s21
    %s24 = sadd.s32 1, %s15
    %s25 = scalar_select %p22, %s24, %s15
    %p26 = scmp.ge.s32.totalorder %s25, 2
    %s27 = scalar_select %p26, 0, %s25
    %s28 = sadd.s32 %s15, %s16
    %s29 = sadd.s32 %s27, %s23
    %s30 = ssub.s32 %s28, %s29
    %p31 = scmp.eq.s32.totalorder %s30, 0
    %s33 = sadd.s32 %s32, 1
    %s34 = scalar_select %p31, %s32, %s33
    %p37 = pneg %p31
    %p38 = scmp.eq.s32.totalorder %s8, 1
    %p39 = por %p37, %p38
    %p40 = scmp.ne.s32.totalorder %s32, %s35
    %p41 = scmp.eq.s32.totalorder %s8, 0
    %p42 = por %p40, %p41
    %p43 = scmp.ne.s32.totalorder %s32, %s35
    %p44 = scmp.eq.s32.totalorder %s13, 1
    %p45 = por %p43, %p44
    %p46 = scmp.ne.s32.totalorder %s35, %s36
    %p47 = scmp.eq.s32.totalorder %s13, 0
    %p48 = por %p46, %p47
    %p49 = scmp.ne.s32.totalorder %s35, %s36
    %p50 = scmp.eq.s32.totalorder %s14, 1
    %p51 = por %p49, %p50
    %p53 = scmp.ne.s32.totalorder %s36, %s52
    %p54 = scmp.eq.s32.totalorder %s14, 0
    %p55 = por %p53, %p54
    %s56 = sadd.s32 %s15, %s16
    %s57 = sadd.s32 %s27, %s23
    %s58 = ssub.s32 %s56, %s57
    %p59 = scmp.eq.s32.totalorder %s58, 0
    %s61 = sadd.s32 %s60, 1
    %s62 = scalar_select %p59, %s60, %s61
    %p65 = pneg %p59
    %p66 = scmp.eq.s32.totalorder %s8, 1
    %p67 = por %p65, %p66
    %p68 = scmp.ne.s32.totalorder %s60, %s63
    %p69 = scmp.eq.s32.totalorder %s8, 0
    %p70 = por %p68, %p69
    %p71 = scmp.ne.s32.totalorder %s60, %s63
    %p72 = scmp.eq.s32.totalorder %s13, 1
    %p73 = por %p71, %p72
    %p74 = scmp.ne.s32.totalorder %s63, %s64
    %p75 = scmp.eq.s32.totalorder %s13, 0
    %p76 = por %p74, %p75
    %p77 = scmp.ne.s32.totalorder %s63, %s64
    %p78 = scmp.eq.s32.totalorder %s14, 1
    %p79 = por %p77, %p78
    %p81 = scmp.ne.s32.totalorder %s64, %s80
    %p82 = scmp.eq.s32.totalorder %s14, 0
    %p83 = por %p81, %p82
    %s84 = ssub.s32 %s15, %s27
    %p85 = scmp.eq.s32.totalorder %s84, 0
    %s87 = sadd.s32 %s86, 1
    %s88 = scalar_select %p85, %s86, %s87
    %p91 = pneg %p85
    %p92 = scmp.eq.s32.totalorder %s8, 1
    %p93 = por %p91, %p92
    %p94 = scmp.ne.s32.totalorder %s86, %s89
    %p95 = scmp.eq.s32.totalorder %s8, 0
    %p96 = por %p94, %p95
    %p97 = scmp.ne.s32.totalorder %s86, %s89
    %p98 = scmp.eq.s32.totalorder %s13, 1
    %p99 = por %p97, %p98
    %p100 = scmp.ne.s32.totalorder %s89, %s90
    %p101 = scmp.eq.s32.totalorder %s13, 0
    %p102 = por %p100, %p101
    %p103 = scmp.ne.s32.totalorder %s89, %s90
    %p104 = scmp.eq.s32.totalorder %s14, 1
    %p105 = por %p103, %p104
    %p107 = scmp.ne.s32.totalorder %s90, %s106
    %p108 = scmp.eq.s32.totalorder %s14, 0
    %p109 = por %p107, %p108
    %p110 = scmp.le.s32.totalorder 1, %s8
    %p111 = scmp.lt.s32.totalorder %s8, 3
    %p112 = pnand %p110, %p111
    %p113 = pneg %p112
    // Predicated region
    $region9: #{_lambda_.1} parent=5 // pred_check
      _
    $region10: #{_lambda_.1} parent=5 // pred_check_branch
      %115 = sbr.rel (%p112) target = $region12
    $region11: #{_lambda_.1} parent=5 // pred_region
      %s116 = ssub.s32 %s8, 1
    $region12: #{_lambda_.1} parent=5 // pred_fallthru
      _
    %p117 = scmp.lt.s32.totalorder %s8, 2
    // Predicated region
    $region13: #{_lambda_.1} parent=5 // pred_check
      %p118 = pneg %p117
    $region14: #{_lambda_.1} parent=5 // pred_check_branch
      %120 = sbr.rel (%p118) target = $region16
    $region15: #{_lambda_.1} parent=5 // pred_region
      // Predicated region
      $region17: #{_lambda_.1} parent=15 // pred_check
        %p121 = pneg %p42
      $region18: #{_lambda_.1} parent=15 // pred_check_branch
        %123 = sbr.rel (%p121) target = $region20
      $region19: #{_lambda_.1} parent=15 // pred_region
        %s124 = sadd.s32 %s15, %s16
        %s125 = smul.u32 4, %s124
        %p126 = scmp.lt.s32.totalorder %s125, 7
        %s127 = scalar_select %p126, %s125, 7
        %s128 = smul.addr %s127, 8
        %s129 = scalar_lea.vmem %s0, %s128
        %s130 = sadd.s32 %s15, %s16
        %s131 = smul.u32 4, %s130
      $region20: #{_lambda_.1} parent=15 // pred_fallthru
        _
      // Predicated region
      $region21: #{_lambda_.1} parent=15 // pred_check
        %p132 = pneg %p70
      $region22: #{_lambda_.1} parent=15 // pred_check_branch
        %134 = sbr.rel (%p132) target = $region24
      $region23: #{_lambda_.1} parent=15 // pred_region
        %s135 = sadd.s32 %s15, %s16
        %s136 = smul.u32 4, %s135
        %p137 = scmp.lt.s32.totalorder %s136, 7
        %s138 = scalar_select %p137, %s136, 7
        %s139 = smul.addr %s138, 8
        %s140 = scalar_lea.vmem %s1, %s139
        %s141 = sadd.s32 %s15, %s16
        %s142 = smul.u32 4, %s141
      $region24: #{_lambda_.1} parent=15 // pred_fallthru
        _
    $region16: #{_lambda_.1} parent=5 // pred_fallthru
      _
    %p143 = scmp.le.s32.totalorder 1, %s8
    %p144 = scmp.lt.s32.totalorder %s8, 3
    %p145 = pnand %p143, %p144
    %p146 = pneg %p145
    // Predicated region
    $region25: #{_lambda_.1} parent=5 // pred_check
      _
    $region26: #{_lambda_.1} parent=5 // pred_check_branch
      %148 = sbr.rel (%p145) target = $region28
    $region27: #{_lambda_.1} parent=5 // pred_region
      %s149 = ssub.s32 %s8, 1
      %s150 = sadd.s32 %s17, %s18
      %s151 = smul.u32 4, %s150
      %p152 = scmp.lt.s32.totalorder %s151, 7
      %s153 = scalar_select %p152, %s151, 7
      %s154 = smul.addr %s153, 8
      %s155 = scalar_lea.vmem %s0, %s154
      %p156 = pneg %p48
      %p157 = pneg %p45
      %s158 = sadd.s32 %s17, %s18
      %s159 = smul.u32 4, %s158
      %p160 = scmp.lt.s32.totalorder %s159, 7
      %s161 = scalar_select %p160, %s159, 7
      %s162 = smul.addr %s161, 8
      %s163 = scalar_lea.vmem %s1, %s162
      %p164 = pneg %p76
      %p165 = pneg %p73
      %p166 = pneg %p102
      %p167 = pneg %p99
      %p168 = scmp.lt.s32.totalorder %s17, 1
      %s169 = scalar_select %p168, %s17, 1
      %s170 = smul.addr %s169, 8
      %s171 = scalar_lea.vmem %s2, %s170
      %s172 = sadd.s32 %s17, %s18
      %s173 = smul.u32 4, %s172
      %p174 = scmp.lt.s32.totalorder %s173, 7
      %s175 = scalar_select %p174, %s173, 7
      %s176 = smul.addr %s175, 8
      %s177 = scalar_lea.vmem %s0, %s176
      %s178 = sadd.s32 %s17, %s18
      %s179 = smul.u32 4, %s178
      %s180 = sadd.s32 %s17, %s18
      %s181 = smul.u32 4, %s180
      %p182 = scmp.lt.s32.totalorder %s181, 7
      %s183 = scalar_select %p182, %s181, 7
      %s184 = smul.addr %s183, 8
      %s185 = scalar_lea.vmem %s1, %s184
      %s186 = sadd.s32 %s17, %s18
      %s187 = smul.u32 4, %s186
      %p188 = scmp.lt.s32.totalorder %s17, 1
      %s189 = scalar_select %p188, %s17, 1
      %s190 = smul.addr %s189, 8
      %s191 = scalar_lea.vmem %s2, %s190
      %p192 = scmp.eq.s32.totalorder %s18, 0
      // Predicated region
      $region29: #{_lambda_.1} parent=27 // pred_check
        %p193 = pneg %p192
      $region30: #{_lambda_.1} parent=27 // pred_check_branch
        %195 = sbr.rel (%p193) target = $region32
      $region31: #{_lambda_.1} parent=27 // pred_region
        %196 = vst [vmem:[%s191] sm:$0xff] 0.0
      $region32: #{_lambda_.1} parent=27 // pred_fallthru
        _
      %v197 = vld [vmem:[%s177] sm:$0xff]
      %v198 = vld [vmem:[%s177 + $0x8] sm:$0xff]
      %v199 = vld [vmem:[%s177 + $0x10] sm:$0xff]
      %v200 = vld [vmem:[%s177 + $0x18] sm:$0xff]
      %v201 = vld [vmem:[%s185] sm:$0xff]
      %v202 = vld [vmem:[%s185 + $0x8] sm:$0xff]
      %v203 = vld [vmem:[%s185 + $0x10] sm:$0xff]
      %v204 = vld [vmem:[%s185 + $0x18] sm:$0xff]
      %v205 = vand.u32 2147483647, %v197
      %v206 = vand.u32 2147483647, %v198
      %v207 = vand.u32 2147483647, %v199
      %v208 = vand.u32 2147483647, %v200
      %v209 = vsub.f32 0.0, %v205
      %v210 = vsub.f32 0.0, %v206
      %v211 = vsub.f32 0.0, %v207
      %v212 = vsub.f32 0.0, %v208
      %v213 = vmul.f32 %v209, 1.442695
      %v214 = vpow.pop %v213
      %v215 = vmul.f32 %v210, 1.442695
      %v216 = vpow.pop %v215
      %v217 = vmul.f32 %v211, 1.442695
      %v218 = vpow.pop %v217
      %v219 = vmul.f32 %v212, 1.442695
      %v220 = vpow.pop %v219
      %v221 = vmax.f32 %v197, 0.0
      %v222 = vmax.f32 %v198, 0.0
      %v223 = vmax.f32 %v199, 0.0
      %v224 = vmax.f32 %v200, 0.0
      %v225 = vmul.f32 %v197, %v201
      %v226 = vmul.f32 %v198, %v202
      %v227 = vmul.f32 %v199, %v203
      %v228 = vmul.f32 %v200, %v204
      %v229 = vsub.f32 %v221, %v225
      %v230 = vsub.f32 %v222, %v226
      %v231 = vsub.f32 %v223, %v227
      %v232 = vsub.f32 %v224, %v228
      %v233 = vadd.f32 %v214, 1.0
      %v234 = vlog2.pop %v233
      %v235 = vmul.f32 %v234, 0.6931472
      %v236 = vmul.f32 -0.5, %v214
      %v237 = vadd.f32 %v236, 1.0
      %v238 = vmul.f32 %v237, %v214
      %v239 = vand.u32 2147483647, %v214
      %vm240 = vcmp.lt.f32.partialorder %v239, 0.0004427343
      %v241 = vsel %vm240, %v238, %v235
      %v242 = vadd.f32 %v216, 1.0
      %v243 = vlog2.pop %v242
      %v244 = vmul.f32 %v243, 0.6931472
      %v245 = vmul.f32 -0.5, %v216
      %v246 = vadd.f32 %v245, 1.0
      %v247 = vmul.f32 %v246, %v216
      %v248 = vand.u32 2147483647, %v216
      %vm249 = vcmp.lt.f32.partialorder %v248, 0.0004427343
      %v250 = vsel %vm249, %v247, %v244
      %v251 = vadd.f32 %v218, 1.0
      %v252 = vlog2.pop %v251
      %v253 = vmul.f32 %v252, 0.6931472
      %v254 = vmul.f32 -0.5, %v218
      %v255 = vadd.f32 %v254, 1.0
      %v256 = vmul.f32 %v255, %v218
      %v257 = vand.u32 2147483647, %v218
      %vm258 = vcmp.lt.f32.partialorder %v257, 0.0004427343
      %v259 = vsel %vm258, %v256, %v253
      %v260 = vadd.f32 %v220, 1.0
      %v261 = vlog2.pop %v260
      %v262 = vmul.f32 %v261, 0.6931472
      %v263 = vmul.f32 -0.5, %v220
      %v264 = vadd.f32 %v263, 1.0
      %v265 = vmul.f32 %v264, %v220
      %v266 = vand.u32 2147483647, %v220
      %vm267 = vcmp.lt.f32.partialorder %v266, 0.0004427343
      %v268 = vsel %vm267, %v265, %v262
      %v269 = vadd.f32 %v229, %v241
      %v270 = vadd.f32 %v230, %v250
      %v271 = vadd.f32 %v231, %v259
      %v272 = vadd.f32 %v232, %v268
      %v273 = vsub.f32 0.0, %v269
      %v274 = vsub.f32 0.0, %v270
      %v275 = vsub.f32 0.0, %v271
      %v276 = vsub.f32 0.0, %v272
      %v277 = vmul.f32 %v273, 1.442695
      %v278 = vpow.pop %v277
      %v279 = vmul.f32 %v274, 1.442695
      %v280 = vpow.pop %v279
      %v281 = vmul.f32 %v275, 1.442695
      %v282 = vpow.pop %v281
      %v283 = vmul.f32 %v276, 1.442695
      %v284 = vpow.pop %v283
      %v285 = vsub.f32 1.0, %v278
      %v286 = vsub.f32 1.0, %v280
      %v287 = vsub.f32 1.0, %v282
      %v288 = vsub.f32 1.0, %v284
      %v289 = vmul.f32 %v285, %v285
      %v290 = vmul.f32 %v286, %v286
      %v291 = vmul.f32 %v287, %v287
      %v292 = vmul.f32 %v288, %v288
      %v293 = vmul.f32 %v289, %v269
      %v294 = vmul.f32 %v290, %v270
      %v295 = vmul.f32 %v291, %v271
      %v296 = vmul.f32 %v292, %v272
      %s297 = sadd.s32 %s17, %s18
      %s298 = smul.u32 %s297, 4096
      %s299 = sadd.s32 %s298, 4096
      %p300 = scmp.gt.s32.totalorder %s299, 2048
      // Predicated region
      $region33: #{_lambda_.1} parent=27 // pred_check
        %p301 = pneg %p300
      $region34: #{_lambda_.1} parent=27 // pred_check_branch
        %303 = sbr.rel (%p301) target = $region36
      $region35: #{_lambda_.1} parent=27 // pred_region
        %v304 = vlaneseq
        %v305 = vshrl.u32 %v304, 7
        %v306 = vadd.s32 %v305, 8
        %v307 = vadd.s32 %v305, 16
        %v308 = vadd.s32 %v305, 24
        %v309 = vlaneseq
        %v310 = vand.u32 %v309, 127
        %v311 = vmul.u32 %v305, 128
        %v312 = vmul.u32 %v306, 128
        %v313 = vmul.u32 %v307, 128
        %v314 = vmul.u32 %v308, 128
        %v315 = vstv %s298
        %v316 = vadd.s32 %v315, %v311
        %v317 = vadd.s32 %v315, %v312
        %v318 = vadd.s32 %v315, %v313
        %v319 = vadd.s32 %v315, %v314
        %v320 = vadd.s32 %v316, %v310
        %v321 = vadd.s32 %v317, %v310
        %v322 = vadd.s32 %v318, %v310
        %v323 = vadd.s32 %v319, %v310
        %vm324 = vcmp.lt.s32.totalorder %v320, 2048
        %vm325 = vcmp.lt.s32.totalorder %v321, 2048
        %vm326 = vcmp.lt.s32.totalorder %v322, 2048
        %vm327 = vcmp.lt.s32.totalorder %v323, 2048
        %v328 = vsel %vm324, %v293, 0.0
        %v329 = vsel %vm325, %v294, 0.0
        %v330 = vsel %vm326, %v295, 0.0
        %v331 = vsel %vm327, %v296, 0.0
        %v332 = vld [vmem:[%s191] sm:$0xff]
        %v333 = vadd.f32 %v328, %v329
        %v334 = vadd.f32 %v333, %v330
        %v335 = vadd.f32 %v334, %v331
        %v336 = vadd.f32 %v332, %v335
        %337 = vst [vmem:[%s191] sm:$0xff] %v336
      $region36: #{_lambda_.1} parent=27 // pred_fallthru
        _
      %p338 = scmp.le.s32.totalorder %s299, 2048
      // Predicated region
      $region37: #{_lambda_.1} parent=27 // pred_check
        %p339 = pneg %p338
      $region38: #{_lambda_.1} parent=27 // pred_check_branch
        %341 = sbr.rel (%p339) target = $region40
      $region39: #{_lambda_.1} parent=27 // pred_region
        %v342 = vld [vmem:[%s191] sm:$0xff]
        %v343 = vadd.f32 %v293, %v294
        %v344 = vadd.f32 %v343, %v295
        %v345 = vadd.f32 %v344, %v296
        %v346 = vadd.f32 %v342, %v345
        %347 = vst [vmem:[%s191] sm:$0xff] %v346
      $region40: #{_lambda_.1} parent=27 // pred_fallthru
        _
      %p348 = scmp.lt.s32.totalorder %s17, 1
      %s349 = scalar_select %p348, %s17, 1
      %s350 = smul.addr %s349, 8
      %s351 = scalar_lea.vmem %s2, %s350
      // Predicated region
      $region41: #{_lambda_.1} parent=27 // pred_check
        %p352 = pneg %p99
      $region42: #{_lambda_.1} parent=27 // pred_check_branch
        %354 = sbr.rel (%p352) target = $region44
      $region43: #{_lambda_.1} parent=27 // pred_region
        _
      $region44: #{_lambda_.1} parent=27 // pred_fallthru
        _
    $region28: #{_lambda_.1} parent=5 // pred_fallthru
      _
    %p355 = scmp.le.s32.totalorder 2, %s8
    // Predicated region
    $region45: #{_lambda_.1} parent=5 // pred_check
      %p356 = pneg %p355
    $region46: #{_lambda_.1} parent=5 // pred_check_branch
      %358 = sbr.rel (%p356) target = $region48
    $region47: #{_lambda_.1} parent=5 // pred_region
      %s359 = ssub.s32 %s8, 2
      // Predicated region
      $region49: #{_lambda_.1} parent=47 // pred_check
        %p360 = pneg %p105
      $region50: #{_lambda_.1} parent=47 // pred_check_branch
        %362 = sbr.rel (%p360) target = $region52
      $region51: #{_lambda_.1} parent=47 // pred_region
        %p363 = scmp.lt.s32.totalorder %s19, 1
        %s364 = scalar_select %p363, %s19, 1
        %s365 = smul.addr %s364, 8
        %s366 = scalar_lea.vmem %s2, %s365
      $region52: #{_lambda_.1} parent=47 // pred_fallthru
        _
    $region48: #{_lambda_.1} parent=5 // pred_fallthru
      _
  $region6: #{_lambda_.1} parent=0 // loop_footer
    %s12 = sadd.s32 1, %s8
  $region7: #{_lambda_.1} parent=0 // loop_footer_branch
    %7 = sbr.rel target = $region3
  $region8: #{_lambda_.1} parent=0 // loop_exit
    _

</llo_original>
